<compile_context>
chip_gen: v7x
topology: tpu7x:2x2x1
jax: 0.10.0
libtpu: 0.0.40
codegen_flags: <defaults>
</compile_context>

<pallas_src>
import jax
import jax.numpy as jnp
from jax.experimental import pallas as pl
from jax.experimental.pallas import tpu as pltpu


def _round_up(x, m):
    return ((x + m - 1) // m) * m


def day_time_embedding(daytime, weekday, day, dt_tab, wd_tab, dy_tab,
                       *, tile_n=256, table_dtype=jnp.bfloat16):
    """Pallas forward of dayTimeEmbedding.

    daytime/weekday/day : int32 [B, S]
    *_tab               : float32 [vocab, d_model] embedding tables
    returns             : float32 [B, S, d_model]
    """
    b, s = daytime.shape
    n = b * s
    d_model = dt_tab.shape[1]

    # ---- fuse the three tables into one lane-aligned (K, d_model) table -------
    wd_pad = _round_up(wd_tab.shape[0], 128)   # 8    -> 128
    dt_pad = _round_up(dt_tab.shape[0], 128)   # 1441 -> 1536
    dy_pad = _round_up(dy_tab.shape[0], 128)   # 367  -> 384
    k_total = wd_pad + dt_pad + dy_pad         # 2048

    def prep_table(tab, v_pad):
        tab = tab.at[0].set(0.0)               # enforce padding_idx=0 in the wrapper
        return jnp.pad(tab, ((0, v_pad - tab.shape[0]), (0, 0)))

    fused_tab = jnp.concatenate(
        [prep_table(wd_tab, wd_pad),
         prep_table(dt_tab, dt_pad),
         prep_table(dy_tab, dy_pad)], axis=0).astype(table_dtype)   # (k_total, d_model)

    # ---- flatten + pad the token axis to a tile multiple -----------------------
    tile_n = min(tile_n, _round_up(n, 8))      # don't over-tile tiny inputs
    n_tiles = pl.cdiv(n, tile_n)
    n_padded = n_tiles * tile_n

    def prep_idx(idx):
        flat = idx.reshape(n).astype(jnp.int32)
        # Pad with 0 (the padding_idx row); padded rows are sliced off anyway.
        # NOTE: out-of-range / negative indices silently contribute zeros
        # (an all-zero one-hot row) instead of raising like nn.Embedding.
        return jnp.pad(flat, (0, n_padded - n)).reshape(n_padded, 1)

    wd_idx = prep_idx(weekday)
    dt_idx = prep_idx(daytime)
    dy_idx = prep_idx(day)

    # ---- kernel ----------------------------------------------------------------
    def kernel(wd_idx_ref, dt_idx_ref, dy_idx_ref, tab_ref, out_ref, oh_ref):
        def write_onehot(idx_ref, col_start, width):
            cols = jax.lax.broadcasted_iota(jnp.int32, (tile_n, width), 1)
            oh_ref[:, col_start:col_start + width] = (
                cols == idx_ref[...]).astype(oh_ref.dtype)

        # Build each one-hot at its own (padded) width into one fused slab.
        write_onehot(wd_idx_ref, 0, wd_pad)
        write_onehot(dt_idx_ref, wd_pad, dt_pad)
        write_onehot(dy_idx_ref, wd_pad + dt_pad, dy_pad)

        # Single MXU matmul == gather + gather + gather + add + add (f32 accum).
        out_ref[...] = jnp.dot(oh_ref[...], tab_ref[...],
                               preferred_element_type=jnp.float32
                               ).astype(out_ref.dtype)
        # TODO(synk): optional lane-dense store ((tile_n, 32) -> (tile_n//4, 128)
        # reshape) skipped pending a bundle-dump check; stores are not the
        # binding slot for this kernel.

    idx_spec = pl.BlockSpec((tile_n, 1), lambda i: (i, 0))

    out = pl.pallas_call(
        kernel,
        out_shape=jax.ShapeDtypeStruct((n_padded, d_model), jnp.float32),
        grid_spec=pltpu.PrefetchScalarGridSpec(
            num_scalar_prefetch=0,
            grid=(n_tiles,),
            in_specs=[
                idx_spec, idx_spec, idx_spec,
                # Fused table: constant block index -> stays VMEM-resident.
                pl.BlockSpec((k_total, d_model), lambda i: (0, 0)),
            ],
            out_specs=pl.BlockSpec((tile_n, d_model), lambda i: (i, 0)),
            scratch_shapes=[pltpu.VMEM((tile_n, k_total), table_dtype)],
        ),
        # Per-step VMEM ~1.5 MiB (1 MiB one-hot scratch + 128 KiB table + idx/out
        # double buffers) -> well under every generation's default scoped limit,
        # so no vmem_limit_bytes override. "parallel" shards tiles over v7x's 2 TCs.
        compiler_params=pltpu.CompilerParams(
            dimension_semantics=("parallel",)),
    )(wd_idx, dt_idx, dy_idx, fused_tab)

    return out[:n].reshape(b, s, d_model)


def _make_table(key, vocab, d_model):
    """nn.Embedding-style init (N(0,1)) with padding_idx=0 row zeroed."""
    w = jax.random.normal(key, (vocab, d_model), dtype=jnp.float32)
    return w.at[0].set(0.0)


if __name__ == "__main__":
    d_model = 32
    batch, seq = 2, 8

    key = jax.random.PRNGKey(0)
    k_dt, k_wd, k_dy, k_i1, k_i2, k_i3 = jax.random.split(key, 6)

    daytime_tab = _make_table(k_dt, 1441, d_model)
    weekday_tab = _make_table(k_wd, 8, d_model)
    day_tab = _make_table(k_dy, 367, d_model)

    daytime = jax.random.randint(k_i1, (batch, seq), 0, 1441, dtype=jnp.int32)
    weekday = jax.random.randint(k_i2, (batch, seq), 0, 8, dtype=jnp.int32)
    day = jax.random.randint(k_i3, (batch, seq), 0, 367, dtype=jnp.int32)
    # Exercise padding_idx=0 on each table.
    daytime = daytime.at[0, 0].set(0)
    weekday = weekday.at[0, 1].set(0)
    day = day.at[1, 0].set(0)

    out = day_time_embedding(daytime, weekday, day,
                             daytime_tab, weekday_tab, day_tab)
    out = jax.block_until_ready(out)
    assert out.shape == (batch, seq, d_model)

    # Reference 1: same-precision (bf16 tables) gather + f32 sum. The kernel's
    # single bf16 MXU matmul with f32 accumulation is exact w.r.t. this.
    def cast_tab(t):
        return t.at[0].set(0.0).astype(jnp.bfloat16).astype(jnp.float32)
    ref_bf16 = (jnp.take(cast_tab(weekday_tab), weekday, axis=0)
                + jnp.take(cast_tab(daytime_tab), daytime, axis=0)
                + jnp.take(cast_tab(day_tab), day, axis=0))
    assert jnp.allclose(out, ref_bf16, atol=1e-5, rtol=1e-5)

    # Reference 2: full-precision f32 semantics of the PyTorch module; only bf16
    # table rounding separates the two (deliberate perf/precision tradeoff).
    ref_f32 = (jnp.take(weekday_tab, weekday, axis=0)
               + jnp.take(daytime_tab, daytime, axis=0)
               + jnp.take(day_tab, day, axis=0))
    assert jnp.allclose(out, ref_f32, atol=1e-1, rtol=0)

    print("KERNEL_OK")
</pallas_src>

<mosaic_0001>
module attributes {stable_mosaic.version = 11 : i64} {
  func.func @kernel(%arg0: i32, %arg1: memref<16x1xi32, #tpu.memory_space<vmem>>, %arg2: memref<16x1xi32, #tpu.memory_space<vmem>>, %arg3: memref<16x1xi32, #tpu.memory_space<vmem>>, %arg4: memref<2048x32xbf16, #tpu.memory_space<vmem>>, %arg5: memref<16x32xf32, #tpu.memory_space<vmem>>, %arg6: memref<16x2048xbf16, #tpu.memory_space<vmem>>) attributes {dimension_semantics = [#tpu.dimension_semantics<parallel>], iteration_bounds = array<i64: 1>, scalar_prefetch = 0 : i64, scratch_operands = 1 : i64, tpu.core_type = #tpu.core_type<tc>, window_params = [{transform_indices = @transform_0, window_bounds = array<i64: 16, 1>}, {transform_indices = @transform_1, window_bounds = array<i64: 16, 1>}, {transform_indices = @transform_2, window_bounds = array<i64: 16, 1>}, {pipeline_mode = #tpu.pipeline_mode<synchronous>, transform_indices = @transform_3, window_bounds = array<i64: 2048, 32>}, {transform_indices = @transform_4, window_bounds = array<i64: 16, 32>}]} {
    %0 = tpu.iota {dimensions = array<i32: 1>} : vector<16x128xi32>
    %c0 = arith.constant 0 : index
    %c0_0 = arith.constant 0 : index
    %1 = vector.load %arg1[%c0, %c0_0] : memref<16x1xi32, #tpu.memory_space<vmem>>, vector<16x1xi32>
    %2 = vector.broadcast %1 : vector<16x1xi32> to vector<16x128xi32>
    %3 = arith.cmpi eq, %0, %2 : vector<16x128xi32>
    %4 = arith.extui %3 : vector<16x128xi1> to vector<16x128xi32>
    %5 = arith.sitofp %4 : vector<16x128xi32> to vector<16x128xf32>
    %6 = arith.truncf %5 : vector<16x128xf32> to vector<16x128xbf16>
    %c0_1 = arith.constant 0 : index
    %c0_2 = arith.constant 0 : index
    %7 = vector.load %arg6[%c0_1, %c0_2] : memref<16x2048xbf16, #tpu.memory_space<vmem>>, vector<16x128xbf16>
    tpu.vector_store %arg6[%c0_1, %c0_2], %6 {strides = array<i32>} : memref<16x2048xbf16, #tpu.memory_space<vmem>>, vector<16x128xbf16>,
    %8 = tpu.iota {dimensions = array<i32: 1>} : vector<16x1536xi32>
    %c0_3 = arith.constant 0 : index
    %c0_4 = arith.constant 0 : index
    %9 = vector.load %arg2[%c0_3, %c0_4] : memref<16x1xi32, #tpu.memory_space<vmem>>, vector<16x1xi32>
    %10 = vector.broadcast %9 : vector<16x1xi32> to vector<16x1536xi32>
    %11 = arith.cmpi eq, %8, %10 : vector<16x1536xi32>
    %12 = arith.extui %11 : vector<16x1536xi1> to vector<16x1536xi32>
    %13 = arith.sitofp %12 : vector<16x1536xi32> to vector<16x1536xf32>
    %14 = arith.truncf %13 : vector<16x1536xf32> to vector<16x1536xbf16>
    %c0_5 = arith.constant 0 : index
    %c128 = arith.constant 128 : index
    %15 = vector.load %arg6[%c0_5, %c128] : memref<16x2048xbf16, #tpu.memory_space<vmem>>, vector<16x1536xbf16>
    tpu.vector_store %arg6[%c0_5, %c128], %14 {strides = array<i32>} : memref<16x2048xbf16, #tpu.memory_space<vmem>>, vector<16x1536xbf16>,
    %16 = tpu.iota {dimensions = array<i32: 1>} : vector<16x384xi32>
    %c0_6 = arith.constant 0 : index
    %c0_7 = arith.constant 0 : index
    %17 = vector.load %arg3[%c0_6, %c0_7] : memref<16x1xi32, #tpu.memory_space<vmem>>, vector<16x1xi32>
    %18 = vector.broadcast %17 : vector<16x1xi32> to vector<16x384xi32>
    %19 = arith.cmpi eq, %16, %18 : vector<16x384xi32>
    %20 = arith.extui %19 : vector<16x384xi1> to vector<16x384xi32>
    %21 = arith.sitofp %20 : vector<16x384xi32> to vector<16x384xf32>
    %22 = arith.truncf %21 : vector<16x384xf32> to vector<16x384xbf16>
    %c0_8 = arith.constant 0 : index
    %c1664 = arith.constant 1664 : index
    %23 = vector.load %arg6[%c0_8, %c1664] : memref<16x2048xbf16, #tpu.memory_space<vmem>>, vector<16x384xbf16>
    tpu.vector_store %arg6[%c0_8, %c1664], %22 {strides = array<i32>} : memref<16x2048xbf16, #tpu.memory_space<vmem>>, vector<16x384xbf16>,
    %c0_9 = arith.constant 0 : index
    %c0_10 = arith.constant 0 : index
    %24 = vector.load %arg6[%c0_9, %c0_10] : memref<16x2048xbf16, #tpu.memory_space<vmem>>, vector<16x2048xbf16>
    %c0_11 = arith.constant 0 : index
    %c0_12 = arith.constant 0 : index
    %25 = vector.load %arg4[%c0_11, %c0_12] : memref<2048x32xbf16, #tpu.memory_space<vmem>>, vector<2048x32xbf16>
    %cst = arith.constant dense<0.000000e+00> : vector<16x32xf32>
    %26 = tpu.matmul %24, %25, %cst {dimension_numbers = #tpu.dot_dimension_numbers<[1], [0], [0], [1], [0, 0, 1, 1], [], []>} : vector<16x2048xbf16>, vector<2048x32xbf16>, vector<16x32xf32> -> vector<16x32xf32>
    %c0_13 = arith.constant 0 : index
    %c0_14 = arith.constant 0 : index
    %27 = vector.load %arg5[%c0_13, %c0_14] : memref<16x32xf32, #tpu.memory_space<vmem>>, vector<16x32xf32>
    tpu.vector_store %arg5[%c0_13, %c0_14], %26 {strides = array<i32>} : memref<16x32xf32, #tpu.memory_space<vmem>>, vector<16x32xf32>,
    return
  }
  func.func @transform_0(%arg0: i32) -> (i32, i32) {
    %c0_i32 = arith.constant 0 : i32
    %c0_i32_0 = arith.constant 0 : i32
    return %arg0, %c0_i32 : i32, i32
  }
  func.func @transform_1(%arg0: i32) -> (i32, i32) {
    %c0_i32 = arith.constant 0 : i32
    %c0_i32_0 = arith.constant 0 : i32
    return %arg0, %c0_i32 : i32, i32
  }
  func.func @transform_2(%arg0: i32) -> (i32, i32) {
    %c0_i32 = arith.constant 0 : i32
    %c0_i32_0 = arith.constant 0 : i32
    return %arg0, %c0_i32 : i32, i32
  }
  func.func @transform_3(%arg0: i32) -> (i32, i32) {
    %c0_i32 = arith.constant 0 : i32
    %c0_i32_0 = arith.constant 0 : i32
    %c0_i32_1 = arith.constant 0 : i32
    return %c0_i32, %c0_i32_0 : i32, i32
  }
  func.func @transform_4(%arg0: i32) -> (i32, i32) {
    %c0_i32 = arith.constant 0 : i32
    %c0_i32_0 = arith.constant 0 : i32
    return %arg0, %c0_i32 : i32, i32
  }
}

</mosaic_0001>

<llo_original>
// kernel: tpu_custom_call.1
$region0: #{tpu_custom_call.1}
  #allocation0 [shape = 'u32[]', space=smem, size = 0x4, offset = 0x4, fixed_abs, tag = 'smem constant byte address 0x4 - core index']
  #allocation1 [shape = 'u32[144,128]{1,0:T(1,128)}', space=vmem, size = 0x12000, scoped, tag = 'internal scratch']
  #allocation2 [shape = 'bf16[16,2048]{1,0:T(16,128)(2,1)}', space=vmem, size = 0x10000, scoped, tag = 'scratch operand']
  %s0 = inlined_call_operand.vmem [shape: s32[16,1], index: 0, kind: input, shape index: {}]
  %s1 = inlined_call_operand.vmem [shape: s32[16,1], index: 1, kind: input, shape index: {}]
  %s2 = inlined_call_operand.vmem [shape: s32[16,1], index: 2, kind: input, shape index: {}]
  %s3 = inlined_call_operand.vmem [shape: bf16[2048,32], index: 3, kind: input, shape index: {}]
  %s4 = inlined_call_operand.hbm [shape: f32[16,32], index: 4, kind: output, shape index: {}]
  %s5 = sld [smem:[#allocation0]]
  $region26: #{tpu_custom_call.1} parent=0
    _
  %s7 = ssub.s32 1, %s5
  %s8 = scalar_select 0, %s7, %s5
  $region1: #{tpu_custom_call.1} parent=0
    #allocation3 [shape = 'u8[8192]{0}', space=vmem, size = 0x2000, scoped, tag = 'output window, operand 0, single buffered']
    #allocation4 [shape = 's32[1]{0}', space=sflag, size = 0x4, scoped, tag = 'scoped memory for tpu_custom_call.1']
    %9 = vsyncpa [#allocation4], 0
    // Predicated region
    $region2: #{tpu_custom_call.1} parent=1 // pred_check
      _
    $region3: #{tpu_custom_call.1} parent=1 // pred_check_branch
      %11 = sbr.rel (0) target = $region5
    $region4: #{tpu_custom_call.1} parent=1 // pred_region
      _
    $region5: #{tpu_custom_call.1} parent=1 // pred_fallthru
      _
    // Predicated region
    $region6: #{tpu_custom_call.1} parent=1 // pred_check
      _
    $region7: #{tpu_custom_call.1} parent=1 // pred_check_branch
      %13 = sbr.rel (0) target = $region9
    $region8: #{tpu_custom_call.1} parent=1 // pred_region
      _
    $region9: #{tpu_custom_call.1} parent=1 // pred_fallthru
      _
    // Predicated region
    $region10: #{tpu_custom_call.1} parent=1 // pred_check
      _
    $region11: #{tpu_custom_call.1} parent=1 // pred_check_branch
      %15 = sbr.rel (0) target = $region13
    $region12: #{tpu_custom_call.1} parent=1 // pred_region
      _
    $region13: #{tpu_custom_call.1} parent=1 // pred_fallthru
      _
    // Predicated region
    $region14: #{tpu_custom_call.1} parent=1 // pred_check
      _
    $region15: #{tpu_custom_call.1} parent=1 // pred_check_branch
      %17 = sbr.rel (0) target = $region17
    $region16: #{tpu_custom_call.1} parent=1 // pred_region
      _
    $region17: #{tpu_custom_call.1} parent=1 // pred_fallthru
      _
    %v19 = vlaneseq
    %v20 = vand.u32 %v19, 127
    %v21 = vld [vmem:[%s0] sm:$0xff]
    %v22 = vld [vmem:[%s0 + $0x8] sm:$0xff]
    %23 = vset.pattern.permute.xlu0 0
    %24 = vperm.xlu0 %23, %v21
    %v25 = vpop.permute.xlu0 %24
    %26 = vset.pattern.permute.xlu0 0
    %27 = vperm.xlu0 %26, %v22
    %v28 = vpop.permute.xlu0 %27
    %vm29 = vcmp.eq.s32.totalorder %v20, %v25
    %vm30 = vcmp.eq.s32.totalorder %v20, %v28
    %v31 = vsel %vm29, 1, 0
    %v32 = vsel %vm30, 1, 0
    %v33 = vcvt.s32.f32 %v31
    %v34 = vcvt.s32.f32 %v32
    %v35 = vpack.c.bf16 %v34, %v33
    %36 = vst [vmem:[#allocation2] sm:$0xff] %v35
    %v37 = vadd.s32 %v20, 128
    %v38 = vadd.s32 %v20, 256
    %v39 = vadd.s32 %v20, 384
    %v40 = vadd.s32 %v20, 512
    %v41 = vadd.s32 %v20, 640
    %v42 = vadd.s32 %v20, 768
    %v43 = vadd.s32 %v20, 896
    %v44 = vadd.s32 %v20, 1024
    %v45 = vadd.s32 %v20, 1152
    %v46 = vadd.s32 %v20, 1280
    %v47 = vadd.s32 %v20, 1408
    %v48 = vld [vmem:[%s1] sm:$0xff]
    %v49 = vld [vmem:[%s1 + $0x8] sm:$0xff]
    %50 = vset.pattern.permute.xlu0 0
    %51 = vperm.xlu0 %50, %v48
    %v52 = vpop.permute.xlu0 %51
    %53 = vset.pattern.permute.xlu0 0
    %54 = vperm.xlu0 %53, %v49
    %v55 = vpop.permute.xlu0 %54
    %vm56 = vcmp.eq.s32.totalorder %v20, %v52
    %vm57 = vcmp.eq.s32.totalorder %v37, %v52
    %vm58 = vcmp.eq.s32.totalorder %v38, %v52
    %vm59 = vcmp.eq.s32.totalorder %v39, %v52
    %vm60 = vcmp.eq.s32.totalorder %v40, %v52
    %vm61 = vcmp.eq.s32.totalorder %v41, %v52
    %vm62 = vcmp.eq.s32.totalorder %v42, %v52
    %vm63 = vcmp.eq.s32.totalorder %v43, %v52
    %vm64 = vcmp.eq.s32.totalorder %v44, %v52
    %vm65 = vcmp.eq.s32.totalorder %v45, %v52
    %vm66 = vcmp.eq.s32.totalorder %v46, %v52
    %vm67 = vcmp.eq.s32.totalorder %v47, %v52
    %vm68 = vcmp.eq.s32.totalorder %v20, %v55
    %vm69 = vcmp.eq.s32.totalorder %v37, %v55
    %vm70 = vcmp.eq.s32.totalorder %v38, %v55
    %vm71 = vcmp.eq.s32.totalorder %v39, %v55
    %vm72 = vcmp.eq.s32.totalorder %v40, %v55
    %vm73 = vcmp.eq.s32.totalorder %v41, %v55
    %vm74 = vcmp.eq.s32.totalorder %v42, %v55
    %vm75 = vcmp.eq.s32.totalorder %v43, %v55
    %vm76 = vcmp.eq.s32.totalorder %v44, %v55
    %vm77 = vcmp.eq.s32.totalorder %v45, %v55
    %vm78 = vcmp.eq.s32.totalorder %v46, %v55
    %vm79 = vcmp.eq.s32.totalorder %v47, %v55
    %v80 = vsel %vm56, 1, 0
    %v81 = vsel %vm57, 1, 0
    %v82 = vsel %vm58, 1, 0
    %v83 = vsel %vm59, 1, 0
    %v84 = vsel %vm60, 1, 0
    %v85 = vsel %vm61, 1, 0
    %v86 = vsel %vm62, 1, 0
    %v87 = vsel %vm63, 1, 0
    %v88 = vsel %vm64, 1, 0
    %v89 = vsel %vm65, 1, 0
    %v90 = vsel %vm66, 1, 0
    %v91 = vsel %vm67, 1, 0
    %v92 = vsel %vm68, 1, 0
    %v93 = vsel %vm69, 1, 0
    %v94 = vsel %vm70, 1, 0
    %v95 = vsel %vm71, 1, 0
    %v96 = vsel %vm72, 1, 0
    %v97 = vsel %vm73, 1, 0
    %v98 = vsel %vm74, 1, 0
    %v99 = vsel %vm75, 1, 0
    %v100 = vsel %vm76, 1, 0
    %v101 = vsel %vm77, 1, 0
    %v102 = vsel %vm78, 1, 0
    %v103 = vsel %vm79, 1, 0
    %v104 = vcvt.s32.f32 %v80
    %v105 = vcvt.s32.f32 %v81
    %v106 = vcvt.s32.f32 %v82
    %v107 = vcvt.s32.f32 %v83
    %v108 = vcvt.s32.f32 %v84
    %v109 = vcvt.s32.f32 %v85
    %v110 = vcvt.s32.f32 %v86
    %v111 = vcvt.s32.f32 %v87
    %v112 = vcvt.s32.f32 %v88
    %v113 = vcvt.s32.f32 %v89
    %v114 = vcvt.s32.f32 %v90
    %v115 = vcvt.s32.f32 %v91
    %v116 = vcvt.s32.f32 %v92
    %v117 = vcvt.s32.f32 %v93
    %v118 = vcvt.s32.f32 %v94
    %v119 = vcvt.s32.f32 %v95
    %v120 = vcvt.s32.f32 %v96
    %v121 = vcvt.s32.f32 %v97
    %v122 = vcvt.s32.f32 %v98
    %v123 = vcvt.s32.f32 %v99
    %v124 = vcvt.s32.f32 %v100
    %v125 = vcvt.s32.f32 %v101
    %v126 = vcvt.s32.f32 %v102
    %v127 = vcvt.s32.f32 %v103
    %v128 = vpack.c.bf16 %v116, %v104
    %v129 = vpack.c.bf16 %v117, %v105
    %v130 = vpack.c.bf16 %v118, %v106
    %v131 = vpack.c.bf16 %v119, %v107
    %v132 = vpack.c.bf16 %v120, %v108
    %v133 = vpack.c.bf16 %v121, %v109
    %v134 = vpack.c.bf16 %v122, %v110
    %v135 = vpack.c.bf16 %v123, %v111
    %v136 = vpack.c.bf16 %v124, %v112
    %v137 = vpack.c.bf16 %v125, %v113
    %v138 = vpack.c.bf16 %v126, %v114
    %v139 = vpack.c.bf16 %v127, %v115
    %140 = vst [vmem:[#allocation2 + $0x8] sm:$0xff] %v128
    %141 = vst [vmem:[#allocation2 + $0x10] sm:$0xff] %v129
    %142 = vst [vmem:[#allocation2 + $0x18] sm:$0xff] %v130
    %143 = vst [vmem:[#allocation2 + $0x20] sm:$0xff] %v131
    %144 = vst [vmem:[#allocation2 + $0x28] sm:$0xff] %v132
    %145 = vst [vmem:[#allocation2 + $0x30] sm:$0xff] %v133
    %146 = vst [vmem:[#allocation2 + $0x38] sm:$0xff] %v134
    %147 = vst [vmem:[#allocation2 + $0x40] sm:$0xff] %v135
    %148 = vst [vmem:[#allocation2 + $0x48] sm:$0xff] %v136
    %149 = vst [vmem:[#allocation2 + $0x50] sm:$0xff] %v137
    %150 = vst [vmem:[#allocation2 + $0x58] sm:$0xff] %v138
    %151 = vst [vmem:[#allocation2 + $0x60] sm:$0xff] %v139
    %v152 = vld [vmem:[%s2] sm:$0xff]
    %v153 = vld [vmem:[%s2 + $0x8] sm:$0xff]
    %154 = vset.pattern.permute.xlu0 0
    %155 = vperm.xlu0 %154, %v152
    %v156 = vpop.permute.xlu0 %155
    %157 = vset.pattern.permute.xlu0 0
    %158 = vperm.xlu0 %157, %v153
    %v159 = vpop.permute.xlu0 %158
    %vm160 = vcmp.eq.s32.totalorder %v20, %v156
    %vm161 = vcmp.eq.s32.totalorder %v37, %v156
    %vm162 = vcmp.eq.s32.totalorder %v38, %v156
    %vm163 = vcmp.eq.s32.totalorder %v20, %v159
    %vm164 = vcmp.eq.s32.totalorder %v37, %v159
    %vm165 = vcmp.eq.s32.totalorder %v38, %v159
    %v166 = vsel %vm160, 1, 0
    %v167 = vsel %vm161, 1, 0
    %v168 = vsel %vm162, 1, 0
    %v169 = vsel %vm163, 1, 0
    %v170 = vsel %vm164, 1, 0
    %v171 = vsel %vm165, 1, 0
    %v172 = vcvt.s32.f32 %v166
    %v173 = vcvt.s32.f32 %v167
    %v174 = vcvt.s32.f32 %v168
    %v175 = vcvt.s32.f32 %v169
    %v176 = vcvt.s32.f32 %v170
    %v177 = vcvt.s32.f32 %v171
    %v178 = vpack.c.bf16 %v175, %v172
    %v179 = vpack.c.bf16 %v176, %v173
    %v180 = vpack.c.bf16 %v177, %v174
    %181 = vst [vmem:[#allocation2 + $0x68] sm:$0xff] %v178
    %182 = vst [vmem:[#allocation2 + $0x70] sm:$0xff] %v179
    %183 = vst [vmem:[#allocation2 + $0x78] sm:$0xff] %v180
    %v184 = vld [vmem:[#allocation2] sm:$0xff]
    %v185 = vld [vmem:[#allocation2 + $0x8] sm:$0xff]
    %v186 = vld [vmem:[#allocation2 + $0x10] sm:$0xff]
    %v187 = vld [vmem:[#allocation2 + $0x18] sm:$0xff]
    %v188 = vld [vmem:[#allocation2 + $0x20] sm:$0xff]
    %v189 = vld [vmem:[#allocation2 + $0x28] sm:$0xff]
    %v190 = vld [vmem:[#allocation2 + $0x30] sm:$0xff]
    %v191 = vld [vmem:[#allocation2 + $0x38] sm:$0xff]
    %v192 = vld [vmem:[#allocation2 + $0x40] sm:$0xff]
    %v193 = vld [vmem:[#allocation2 + $0x48] sm:$0xff]
    %v194 = vld [vmem:[#allocation2 + $0x50] sm:$0xff]
    %v195 = vld [vmem:[#allocation2 + $0x58] sm:$0xff]
    %v196 = vld [vmem:[#allocation2 + $0x60] sm:$0xff]
    %v197 = vld [vmem:[#allocation2 + $0x68] sm:$0xff]
    %v198 = vld [vmem:[#allocation2 + $0x70] sm:$0xff]
    %v199 = vld [vmem:[#allocation2 + $0x78] sm:$0xff]
    %v200 = vld [vmem:[%s3] sm:$0xf]
    %v201 = vld [vmem:[%s3 + $0x4] sm:$0xf]
    %v202 = vld [vmem:[%s3 + $0x8] sm:$0xf]
    %v203 = vld [vmem:[%s3 + $0xc] sm:$0xf]
    %v204 = vld [vmem:[%s3 + $0x10] sm:$0xf]
    %v205 = vld [vmem:[%s3 + $0x14] sm:$0xf]
    %v206 = vld [vmem:[%s3 + $0x18] sm:$0xf]
    %v207 = vld [vmem:[%s3 + $0x1c] sm:$0xf]
    %v208 = vld [vmem:[%s3 + $0x20] sm:$0xf]
    %v209 = vld [vmem:[%s3 + $0x24] sm:$0xf]
    %v210 = vld [vmem:[%s3 + $0x28] sm:$0xf]
    %v211 = vld [vmem:[%s3 + $0x2c] sm:$0xf]
    %v212 = vld [vmem:[%s3 + $0x30] sm:$0xf]
    %v213 = vld [vmem:[%s3 + $0x34] sm:$0xf]
    %v214 = vld [vmem:[%s3 + $0x38] sm:$0xf]
    %v215 = vld [vmem:[%s3 + $0x3c] sm:$0xf]
    %v216 = vld [vmem:[%s3 + $0x40] sm:$0xf]
    %v217 = vld [vmem:[%s3 + $0x44] sm:$0xf]
    %v218 = vld [vmem:[%s3 + $0x48] sm:$0xf]
    %v219 = vld [vmem:[%s3 + $0x4c] sm:$0xf]
    %v220 = vld [vmem:[%s3 + $0x50] sm:$0xf]
    %v221 = vld [vmem:[%s3 + $0x54] sm:$0xf]
    %v222 = vld [vmem:[%s3 + $0x58] sm:$0xf]
    %v223 = vld [vmem:[%s3 + $0x5c] sm:$0xf]
    %v224 = vld [vmem:[%s3 + $0x60] sm:$0xf]
    %v225 = vld [vmem:[%s3 + $0x64] sm:$0xf]
    %v226 = vld [vmem:[%s3 + $0x68] sm:$0xf]
    %v227 = vld [vmem:[%s3 + $0x6c] sm:$0xf]
    %v228 = vld [vmem:[%s3 + $0x70] sm:$0xf]
    %v229 = vld [vmem:[%s3 + $0x74] sm:$0xf]
    %v230 = vld [vmem:[%s3 + $0x78] sm:$0xf]
    %v231 = vld [vmem:[%s3 + $0x7c] sm:$0xf]
    %v232 = vld [vmem:[%s3 + $0x80] sm:$0xf]
    %v233 = vld [vmem:[%s3 + $0x84] sm:$0xf]
    %v234 = vld [vmem:[%s3 + $0x88] sm:$0xf]
    %v235 = vld [vmem:[%s3 + $0x8c] sm:$0xf]
    %v236 = vld [vmem:[%s3 + $0x90] sm:$0xf]
    %v237 = vld [vmem:[%s3 + $0x94] sm:$0xf]
    %v238 = vld [vmem:[%s3 + $0x98] sm:$0xf]
    %v239 = vld [vmem:[%s3 + $0x9c] sm:$0xf]
    %v240 = vld [vmem:[%s3 + $0xa0] sm:$0xf]
    %v241 = vld [vmem:[%s3 + $0xa4] sm:$0xf]
    %v242 = vld [vmem:[%s3 + $0xa8] sm:$0xf]
    %v243 = vld [vmem:[%s3 + $0xac] sm:$0xf]
    %v244 = vld [vmem:[%s3 + $0xb0] sm:$0xf]
    %v245 = vld [vmem:[%s3 + $0xb4] sm:$0xf]
    %v246 = vld [vmem:[%s3 + $0xb8] sm:$0xf]
    %v247 = vld [vmem:[%s3 + $0xbc] sm:$0xf]
    %v248 = vld [vmem:[%s3 + $0xc0] sm:$0xf]
    %v249 = vld [vmem:[%s3 + $0xc4] sm:$0xf]
    %v250 = vld [vmem:[%s3 + $0xc8] sm:$0xf]
    %v251 = vld [vmem:[%s3 + $0xcc] sm:$0xf]
    %v252 = vld [vmem:[%s3 + $0xd0] sm:$0xf]
    %v253 = vld [vmem:[%s3 + $0xd4] sm:$0xf]
    %v254 = vld [vmem:[%s3 + $0xd8] sm:$0xf]
    %v255 = vld [vmem:[%s3 + $0xdc] sm:$0xf]
    %v256 = vld [vmem:[%s3 + $0xe0] sm:$0xf]
    %v257 = vld [vmem:[%s3 + $0xe4] sm:$0xf]
    %v258 = vld [vmem:[%s3 + $0xe8] sm:$0xf]
    %v259 = vld [vmem:[%s3 + $0xec] sm:$0xf]
    %v260 = vld [vmem:[%s3 + $0xf0] sm:$0xf]
    %v261 = vld [vmem:[%s3 + $0xf4] sm:$0xf]
    %v262 = vld [vmem:[%s3 + $0xf8] sm:$0xf]
    %v263 = vld [vmem:[%s3 + $0xfc] sm:$0xf]
    %v264 = vld [vmem:[%s3 + $0x100] sm:$0xf]
    %v265 = vld [vmem:[%s3 + $0x104] sm:$0xf]
    %v266 = vld [vmem:[%s3 + $0x108] sm:$0xf]
    %v267 = vld [vmem:[%s3 + $0x10c] sm:$0xf]
    %v268 = vld [vmem:[%s3 + $0x110] sm:$0xf]
    %v269 = vld [vmem:[%s3 + $0x114] sm:$0xf]
    %v270 = vld [vmem:[%s3 + $0x118] sm:$0xf]
    %v271 = vld [vmem:[%s3 + $0x11c] sm:$0xf]
    %v272 = vld [vmem:[%s3 + $0x120] sm:$0xf]
    %v273 = vld [vmem:[%s3 + $0x124] sm:$0xf]
    %v274 = vld [vmem:[%s3 + $0x128] sm:$0xf]
    %v275 = vld [vmem:[%s3 + $0x12c] sm:$0xf]
    %v276 = vld [vmem:[%s3 + $0x130] sm:$0xf]
    %v277 = vld [vmem:[%s3 + $0x134] sm:$0xf]
    %v278 = vld [vmem:[%s3 + $0x138] sm:$0xf]
    %v279 = vld [vmem:[%s3 + $0x13c] sm:$0xf]
    %v280 = vld [vmem:[%s3 + $0x140] sm:$0xf]
    %v281 = vld [vmem:[%s3 + $0x144] sm:$0xf]
    %v282 = vld [vmem:[%s3 + $0x148] sm:$0xf]
    %v283 = vld [vmem:[%s3 + $0x14c] sm:$0xf]
    %v284 = vld [vmem:[%s3 + $0x150] sm:$0xf]
    %v285 = vld [vmem:[%s3 + $0x154] sm:$0xf]
    %v286 = vld [vmem:[%s3 + $0x158] sm:$0xf]
    %v287 = vld [vmem:[%s3 + $0x15c] sm:$0xf]
    %v288 = vld [vmem:[%s3 + $0x160] sm:$0xf]
    %v289 = vld [vmem:[%s3 + $0x164] sm:$0xf]
    %v290 = vld [vmem:[%s3 + $0x168] sm:$0xf]
    %v291 = vld [vmem:[%s3 + $0x16c] sm:$0xf]
    %v292 = vld [vmem:[%s3 + $0x170] sm:$0xf]
    %v293 = vld [vmem:[%s3 + $0x174] sm:$0xf]
    %v294 = vld [vmem:[%s3 + $0x178] sm:$0xf]
    %v295 = vld [vmem:[%s3 + $0x17c] sm:$0xf]
    %v296 = vld [vmem:[%s3 + $0x180] sm:$0xf]
    %v297 = vld [vmem:[%s3 + $0x184] sm:$0xf]
    %v298 = vld [vmem:[%s3 + $0x188] sm:$0xf]
    %v299 = vld [vmem:[%s3 + $0x18c] sm:$0xf]
    %v300 = vld [vmem:[%s3 + $0x190] sm:$0xf]
    %v301 = vld [vmem:[%s3 + $0x194] sm:$0xf]
    %v302 = vld [vmem:[%s3 + $0x198] sm:$0xf]
    %v303 = vld [vmem:[%s3 + $0x19c] sm:$0xf]
    %v304 = vld [vmem:[%s3 + $0x1a0] sm:$0xf]
    %v305 = vld [vmem:[%s3 + $0x1a4] sm:$0xf]
    %v306 = vld [vmem:[%s3 + $0x1a8] sm:$0xf]
    %v307 = vld [vmem:[%s3 + $0x1ac] sm:$0xf]
    %v308 = vld [vmem:[%s3 + $0x1b0] sm:$0xf]
    %v309 = vld [vmem:[%s3 + $0x1b4] sm:$0xf]
    %v310 = vld [vmem:[%s3 + $0x1b8] sm:$0xf]
    %v311 = vld [vmem:[%s3 + $0x1bc] sm:$0xf]
    %v312 = vld [vmem:[%s3 + $0x1c0] sm:$0xf]
    %v313 = vld [vmem:[%s3 + $0x1c4] sm:$0xf]
    %v314 = vld [vmem:[%s3 + $0x1c8] sm:$0xf]
    %v315 = vld [vmem:[%s3 + $0x1cc] sm:$0xf]
    %v316 = vld [vmem:[%s3 + $0x1d0] sm:$0xf]
    %v317 = vld [vmem:[%s3 + $0x1d4] sm:$0xf]
    %v318 = vld [vmem:[%s3 + $0x1d8] sm:$0xf]
    %v319 = vld [vmem:[%s3 + $0x1dc] sm:$0xf]
    %v320 = vld [vmem:[%s3 + $0x1e0] sm:$0xf]
    %v321 = vld [vmem:[%s3 + $0x1e4] sm:$0xf]
    %v322 = vld [vmem:[%s3 + $0x1e8] sm:$0xf]
    %v323 = vld [vmem:[%s3 + $0x1ec] sm:$0xf]
    %v324 = vld [vmem:[%s3 + $0x1f0] sm:$0xf]
    %v325 = vld [vmem:[%s3 + $0x1f4] sm:$0xf]
    %v326 = vld [vmem:[%s3 + $0x1f8] sm:$0xf]
    %v327 = vld [vmem:[%s3 + $0x1fc] sm:$0xf]
    %v328 = vld [vmem:[%s3 + $0x200] sm:$0xf]
    %v329 = vld [vmem:[%s3 + $0x204] sm:$0xf]
    %v330 = vld [vmem:[%s3 + $0x208] sm:$0xf]
    %v331 = vld [vmem:[%s3 + $0x20c] sm:$0xf]
    %v332 = vld [vmem:[%s3 + $0x210] sm:$0xf]
    %v333 = vld [vmem:[%s3 + $0x214] sm:$0xf]
    %v334 = vld [vmem:[%s3 + $0x218] sm:$0xf]
    %v335 = vld [vmem:[%s3 + $0x21c] sm:$0xf]
    %v336 = vld [vmem:[%s3 + $0x220] sm:$0xf]
    %v337 = vld [vmem:[%s3 + $0x224] sm:$0xf]
    %v338 = vld [vmem:[%s3 + $0x228] sm:$0xf]
    %v339 = vld [vmem:[%s3 + $0x22c] sm:$0xf]
    %v340 = vld [vmem:[%s3 + $0x230] sm:$0xf]
    %v341 = vld [vmem:[%s3 + $0x234] sm:$0xf]
    %v342 = vld [vmem:[%s3 + $0x238] sm:$0xf]
    %v343 = vld [vmem:[%s3 + $0x23c] sm:$0xf]
    %v344 = vld [vmem:[%s3 + $0x240] sm:$0xf]
    %v345 = vld [vmem:[%s3 + $0x244] sm:$0xf]
    %v346 = vld [vmem:[%s3 + $0x248] sm:$0xf]
    %v347 = vld [vmem:[%s3 + $0x24c] sm:$0xf]
    %v348 = vld [vmem:[%s3 + $0x250] sm:$0xf]
    %v349 = vld [vmem:[%s3 + $0x254] sm:$0xf]
    %v350 = vld [vmem:[%s3 + $0x258] sm:$0xf]
    %v351 = vld [vmem:[%s3 + $0x25c] sm:$0xf]
    %v352 = vld [vmem:[%s3 + $0x260] sm:$0xf]
    %v353 = vld [vmem:[%s3 + $0x264] sm:$0xf]
    %v354 = vld [vmem:[%s3 + $0x268] sm:$0xf]
    %v355 = vld [vmem:[%s3 + $0x26c] sm:$0xf]
    %v356 = vld [vmem:[%s3 + $0x270] sm:$0xf]
    %v357 = vld [vmem:[%s3 + $0x274] sm:$0xf]
    %v358 = vld [vmem:[%s3 + $0x278] sm:$0xf]
    %v359 = vld [vmem:[%s3 + $0x27c] sm:$0xf]
    %v360 = vld [vmem:[%s3 + $0x280] sm:$0xf]
    %v361 = vld [vmem:[%s3 + $0x284] sm:$0xf]
    %v362 = vld [vmem:[%s3 + $0x288] sm:$0xf]
    %v363 = vld [vmem:[%s3 + $0x28c] sm:$0xf]
    %v364 = vld [vmem:[%s3 + $0x290] sm:$0xf]
    %v365 = vld [vmem:[%s3 + $0x294] sm:$0xf]
    %v366 = vld [vmem:[%s3 + $0x298] sm:$0xf]
    %v367 = vld [vmem:[%s3 + $0x29c] sm:$0xf]
    %v368 = vld [vmem:[%s3 + $0x2a0] sm:$0xf]
    %v369 = vld [vmem:[%s3 + $0x2a4] sm:$0xf]
    %v370 = vld [vmem:[%s3 + $0x2a8] sm:$0xf]
    %v371 = vld [vmem:[%s3 + $0x2ac] sm:$0xf]
    %v372 = vld [vmem:[%s3 + $0x2b0] sm:$0xf]
    %v373 = vld [vmem:[%s3 + $0x2b4] sm:$0xf]
    %v374 = vld [vmem:[%s3 + $0x2b8] sm:$0xf]
    %v375 = vld [vmem:[%s3 + $0x2bc] sm:$0xf]
    %v376 = vld [vmem:[%s3 + $0x2c0] sm:$0xf]
    %v377 = vld [vmem:[%s3 + $0x2c4] sm:$0xf]
    %v378 = vld [vmem:[%s3 + $0x2c8] sm:$0xf]
    %v379 = vld [vmem:[%s3 + $0x2cc] sm:$0xf]
    %v380 = vld [vmem:[%s3 + $0x2d0] sm:$0xf]
    %v381 = vld [vmem:[%s3 + $0x2d4] sm:$0xf]
    %v382 = vld [vmem:[%s3 + $0x2d8] sm:$0xf]
    %v383 = vld [vmem:[%s3 + $0x2dc] sm:$0xf]
    %v384 = vld [vmem:[%s3 + $0x2e0] sm:$0xf]
    %v385 = vld [vmem:[%s3 + $0x2e4] sm:$0xf]
    %v386 = vld [vmem:[%s3 + $0x2e8] sm:$0xf]
    %v387 = vld [vmem:[%s3 + $0x2ec] sm:$0xf]
    %v388 = vld [vmem:[%s3 + $0x2f0] sm:$0xf]
    %v389 = vld [vmem:[%s3 + $0x2f4] sm:$0xf]
    %v390 = vld [vmem:[%s3 + $0x2f8] sm:$0xf]
    %v391 = vld [vmem:[%s3 + $0x2fc] sm:$0xf]
    %v392 = vld [vmem:[%s3 + $0x300] sm:$0xf]
    %v393 = vld [vmem:[%s3 + $0x304] sm:$0xf]
    %v394 = vld [vmem:[%s3 + $0x308] sm:$0xf]
    %v395 = vld [vmem:[%s3 + $0x30c] sm:$0xf]
    %v396 = vld [vmem:[%s3 + $0x310] sm:$0xf]
    %v397 = vld [vmem:[%s3 + $0x314] sm:$0xf]
    %v398 = vld [vmem:[%s3 + $0x318] sm:$0xf]
    %v399 = vld [vmem:[%s3 + $0x31c] sm:$0xf]
    %v400 = vld [vmem:[%s3 + $0x320] sm:$0xf]
    %v401 = vld [vmem:[%s3 + $0x324] sm:$0xf]
    %v402 = vld [vmem:[%s3 + $0x328] sm:$0xf]
    %v403 = vld [vmem:[%s3 + $0x32c] sm:$0xf]
    %v404 = vld [vmem:[%s3 + $0x330] sm:$0xf]
    %v405 = vld [vmem:[%s3 + $0x334] sm:$0xf]
    %v406 = vld [vmem:[%s3 + $0x338] sm:$0xf]
    %v407 = vld [vmem:[%s3 + $0x33c] sm:$0xf]
    %v408 = vld [vmem:[%s3 + $0x340] sm:$0xf]
    %v409 = vld [vmem:[%s3 + $0x344] sm:$0xf]
    %v410 = vld [vmem:[%s3 + $0x348] sm:$0xf]
    %v411 = vld [vmem:[%s3 + $0x34c] sm:$0xf]
    %v412 = vld [vmem:[%s3 + $0x350] sm:$0xf]
    %v413 = vld [vmem:[%s3 + $0x354] sm:$0xf]
    %v414 = vld [vmem:[%s3 + $0x358] sm:$0xf]
    %v415 = vld [vmem:[%s3 + $0x35c] sm:$0xf]
    %v416 = vld [vmem:[%s3 + $0x360] sm:$0xf]
    %v417 = vld [vmem:[%s3 + $0x364] sm:$0xf]
    %v418 = vld [vmem:[%s3 + $0x368] sm:$0xf]
    %v419 = vld [vmem:[%s3 + $0x36c] sm:$0xf]
    %v420 = vld [vmem:[%s3 + $0x370] sm:$0xf]
    %v421 = vld [vmem:[%s3 + $0x374] sm:$0xf]
    %v422 = vld [vmem:[%s3 + $0x378] sm:$0xf]
    %v423 = vld [vmem:[%s3 + $0x37c] sm:$0xf]
    %v424 = vld [vmem:[%s3 + $0x380] sm:$0xf]
    %v425 = vld [vmem:[%s3 + $0x384] sm:$0xf]
    %v426 = vld [vmem:[%s3 + $0x388] sm:$0xf]
    %v427 = vld [vmem:[%s3 + $0x38c] sm:$0xf]
    %v428 = vld [vmem:[%s3 + $0x390] sm:$0xf]
    %v429 = vld [vmem:[%s3 + $0x394] sm:$0xf]
    %v430 = vld [vmem:[%s3 + $0x398] sm:$0xf]
    %v431 = vld [vmem:[%s3 + $0x39c] sm:$0xf]
    %v432 = vld [vmem:[%s3 + $0x3a0] sm:$0xf]
    %v433 = vld [vmem:[%s3 + $0x3a4] sm:$0xf]
    %v434 = vld [vmem:[%s3 + $0x3a8] sm:$0xf]
    %v435 = vld [vmem:[%s3 + $0x3ac] sm:$0xf]
    %v436 = vld [vmem:[%s3 + $0x3b0] sm:$0xf]
    %v437 = vld [vmem:[%s3 + $0x3b4] sm:$0xf]
    %v438 = vld [vmem:[%s3 + $0x3b8] sm:$0xf]
    %v439 = vld [vmem:[%s3 + $0x3bc] sm:$0xf]
    %v440 = vld [vmem:[%s3 + $0x3c0] sm:$0xf]
    %v441 = vld [vmem:[%s3 + $0x3c4] sm:$0xf]
    %v442 = vld [vmem:[%s3 + $0x3c8] sm:$0xf]
    %v443 = vld [vmem:[%s3 + $0x3cc] sm:$0xf]
    %v444 = vld [vmem:[%s3 + $0x3d0] sm:$0xf]
    %v445 = vld [vmem:[%s3 + $0x3d4] sm:$0xf]
    %v446 = vld [vmem:[%s3 + $0x3d8] sm:$0xf]
    %v447 = vld [vmem:[%s3 + $0x3dc] sm:$0xf]
    %v448 = vld [vmem:[%s3 + $0x3e0] sm:$0xf]
    %v449 = vld [vmem:[%s3 + $0x3e4] sm:$0xf]
    %v450 = vld [vmem:[%s3 + $0x3e8] sm:$0xf]
    %v451 = vld [vmem:[%s3 + $0x3ec] sm:$0xf]
    %v452 = vld [vmem:[%s3 + $0x3f0] sm:$0xf]
    %v453 = vld [vmem:[%s3 + $0x3f4] sm:$0xf]
    %v454 = vld [vmem:[%s3 + $0x3f8] sm:$0xf]
    %v455 = vld [vmem:[%s3 + $0x3fc] sm:$0xf]
    %v712 = vunpack.c.l.b16 %v200
    %v713 = vunpack.c.l.b16 %v201
    %v714 = vunpack.c.l.b16 %v202
    %v715 = vunpack.c.l.b16 %v203
    %v716 = vunpack.c.l.b16 %v204
    %v717 = vunpack.c.l.b16 %v205
    %v718 = vunpack.c.l.b16 %v206
    %v719 = vunpack.c.l.b16 %v207
    %v720 = vunpack.c.l.b16 %v208
    %v721 = vunpack.c.l.b16 %v209
    %v722 = vunpack.c.l.b16 %v210
    %v723 = vunpack.c.l.b16 %v211
    %v724 = vunpack.c.l.b16 %v212
    %v725 = vunpack.c.l.b16 %v213
    %v726 = vunpack.c.l.b16 %v214
    %v727 = vunpack.c.l.b16 %v215
    %v728 = vunpack.c.l.b16 %v216
    %v729 = vunpack.c.l.b16 %v217
    %v730 = vunpack.c.l.b16 %v218
    %v731 = vunpack.c.l.b16 %v219
    %v732 = vunpack.c.l.b16 %v220
    %v733 = vunpack.c.l.b16 %v221
    %v734 = vunpack.c.l.b16 %v222
    %v735 = vunpack.c.l.b16 %v223
    %v736 = vunpack.c.l.b16 %v224
    %v737 = vunpack.c.l.b16 %v225
    %v738 = vunpack.c.l.b16 %v226
    %v739 = vunpack.c.l.b16 %v227
    %v740 = vunpack.c.l.b16 %v228
    %v741 = vunpack.c.l.b16 %v229
    %v742 = vunpack.c.l.b16 %v230
    %v743 = vunpack.c.l.b16 %v231
    %v744 = vunpack.c.l.b16 %v232
    %v745 = vunpack.c.l.b16 %v233
    %v746 = vunpack.c.l.b16 %v234
    %v747 = vunpack.c.l.b16 %v235
    %v748 = vunpack.c.l.b16 %v236
    %v749 = vunpack.c.l.b16 %v237
    %v750 = vunpack.c.l.b16 %v238
    %v751 = vunpack.c.l.b16 %v239
    %v752 = vunpack.c.l.b16 %v240
    %v753 = vunpack.c.l.b16 %v241
    %v754 = vunpack.c.l.b16 %v242
    %v755 = vunpack.c.l.b16 %v243
    %v756 = vunpack.c.l.b16 %v244
    %v757 = vunpack.c.l.b16 %v245
    %v758 = vunpack.c.l.b16 %v246
    %v759 = vunpack.c.l.b16 %v247
    %v760 = vunpack.c.l.b16 %v248
    %v761 = vunpack.c.l.b16 %v249
    %v762 = vunpack.c.l.b16 %v250
    %v763 = vunpack.c.l.b16 %v251
    %v764 = vunpack.c.l.b16 %v252
    %v765 = vunpack.c.l.b16 %v253
    %v766 = vunpack.c.l.b16 %v254
    %v767 = vunpack.c.l.b16 %v255
    %v768 = vunpack.c.l.b16 %v256
    %v769 = vunpack.c.l.b16 %v257
    %v770 = vunpack.c.l.b16 %v258
    %v771 = vunpack.c.l.b16 %v259
    %v772 = vunpack.c.l.b16 %v260
    %v773 = vunpack.c.l.b16 %v261
    %v774 = vunpack.c.l.b16 %v262
    %v775 = vunpack.c.l.b16 %v263
    %v776 = vunpack.c.l.b16 %v264
    %v777 = vunpack.c.l.b16 %v265
    %v778 = vunpack.c.l.b16 %v266
    %v779 = vunpack.c.l.b16 %v267
    %v780 = vunpack.c.l.b16 %v268
    %v781 = vunpack.c.l.b16 %v269
    %v782 = vunpack.c.l.b16 %v270
    %v783 = vunpack.c.l.b16 %v271
    %v784 = vunpack.c.l.b16 %v272
    %v785 = vunpack.c.l.b16 %v273
    %v786 = vunpack.c.l.b16 %v274
    %v787 = vunpack.c.l.b16 %v275
    %v788 = vunpack.c.l.b16 %v276
    %v789 = vunpack.c.l.b16 %v277
    %v790 = vunpack.c.l.b16 %v278
    %v791 = vunpack.c.l.b16 %v279
    %v792 = vunpack.c.l.b16 %v280
    %v793 = vunpack.c.l.b16 %v281
    %v794 = vunpack.c.l.b16 %v282
    %v795 = vunpack.c.l.b16 %v283
    %v796 = vunpack.c.l.b16 %v284
    %v797 = vunpack.c.l.b16 %v285
    %v798 = vunpack.c.l.b16 %v286
    %v799 = vunpack.c.l.b16 %v287
    %v800 = vunpack.c.l.b16 %v288
    %v801 = vunpack.c.l.b16 %v289
    %v802 = vunpack.c.l.b16 %v290
    %v803 = vunpack.c.l.b16 %v291
    %v804 = vunpack.c.l.b16 %v292
    %v805 = vunpack.c.l.b16 %v293
    %v806 = vunpack.c.l.b16 %v294
    %v807 = vunpack.c.l.b16 %v295
    %v808 = vunpack.c.l.b16 %v296
    %v809 = vunpack.c.l.b16 %v297
    %v810 = vunpack.c.l.b16 %v298
    %v811 = vunpack.c.l.b16 %v299
    %v812 = vunpack.c.l.b16 %v300
    %v813 = vunpack.c.l.b16 %v301
    %v814 = vunpack.c.l.b16 %v302
    %v815 = vunpack.c.l.b16 %v303
    %v816 = vunpack.c.l.b16 %v304
    %v817 = vunpack.c.l.b16 %v305
    %v818 = vunpack.c.l.b16 %v306
    %v819 = vunpack.c.l.b16 %v307
    %v820 = vunpack.c.l.b16 %v308
    %v821 = vunpack.c.l.b16 %v309
    %v822 = vunpack.c.l.b16 %v310
    %v823 = vunpack.c.l.b16 %v311
    %v824 = vunpack.c.l.b16 %v312
    %v825 = vunpack.c.l.b16 %v313
    %v826 = vunpack.c.l.b16 %v314
    %v827 = vunpack.c.l.b16 %v315
    %v828 = vunpack.c.l.b16 %v316
    %v829 = vunpack.c.l.b16 %v317
    %v830 = vunpack.c.l.b16 %v318
    %v831 = vunpack.c.l.b16 %v319
    %v832 = vunpack.c.l.b16 %v320
    %v833 = vunpack.c.l.b16 %v321
    %v834 = vunpack.c.l.b16 %v322
    %v835 = vunpack.c.l.b16 %v323
    %v836 = vunpack.c.l.b16 %v324
    %v837 = vunpack.c.l.b16 %v325
    %v838 = vunpack.c.l.b16 %v326
    %v839 = vunpack.c.l.b16 %v327
    %v840 = vunpack.c.l.b16 %v328
    %v841 = vunpack.c.l.b16 %v329
    %v842 = vunpack.c.l.b16 %v330
    %v843 = vunpack.c.l.b16 %v331
    %v844 = vunpack.c.l.b16 %v332
    %v845 = vunpack.c.l.b16 %v333
    %v846 = vunpack.c.l.b16 %v334
    %v847 = vunpack.c.l.b16 %v335
    %v848 = vunpack.c.l.b16 %v336
    %v849 = vunpack.c.l.b16 %v337
    %v850 = vunpack.c.l.b16 %v338
    %v851 = vunpack.c.l.b16 %v339
    %v852 = vunpack.c.l.b16 %v340
    %v853 = vunpack.c.l.b16 %v341
    %v854 = vunpack.c.l.b16 %v342
    %v855 = vunpack.c.l.b16 %v343
    %v856 = vunpack.c.l.b16 %v344
    %v857 = vunpack.c.l.b16 %v345
    %v858 = vunpack.c.l.b16 %v346
    %v859 = vunpack.c.l.b16 %v347
    %v860 = vunpack.c.l.b16 %v348
    %v861 = vunpack.c.l.b16 %v349
    %v862 = vunpack.c.l.b16 %v350
    %v863 = vunpack.c.l.b16 %v351
    %v864 = vunpack.c.l.b16 %v352
    %v865 = vunpack.c.l.b16 %v353
    %v866 = vunpack.c.l.b16 %v354
    %v867 = vunpack.c.l.b16 %v355
    %v868 = vunpack.c.l.b16 %v356
    %v869 = vunpack.c.l.b16 %v357
    %v870 = vunpack.c.l.b16 %v358
    %v871 = vunpack.c.l.b16 %v359
    %v872 = vunpack.c.l.b16 %v360
    %v873 = vunpack.c.l.b16 %v361
    %v874 = vunpack.c.l.b16 %v362
    %v875 = vunpack.c.l.b16 %v363
    %v876 = vunpack.c.l.b16 %v364
    %v877 = vunpack.c.l.b16 %v365
    %v878 = vunpack.c.l.b16 %v366
    %v879 = vunpack.c.l.b16 %v367
    %v880 = vunpack.c.l.b16 %v368
    %v881 = vunpack.c.l.b16 %v369
    %v882 = vunpack.c.l.b16 %v370
    %v883 = vunpack.c.l.b16 %v371
    %v884 = vunpack.c.l.b16 %v372
    %v885 = vunpack.c.l.b16 %v373
    %v886 = vunpack.c.l.b16 %v374
    %v887 = vunpack.c.l.b16 %v375
    %v888 = vunpack.c.l.b16 %v376
    %v889 = vunpack.c.l.b16 %v377
    %v890 = vunpack.c.l.b16 %v378
    %v891 = vunpack.c.l.b16 %v379
    %v892 = vunpack.c.l.b16 %v380
    %v893 = vunpack.c.l.b16 %v381
    %v894 = vunpack.c.l.b16 %v382
    %v895 = vunpack.c.l.b16 %v383
    %v896 = vunpack.c.l.b16 %v384
    %v897 = vunpack.c.l.b16 %v385
    %v898 = vunpack.c.l.b16 %v386
    %v899 = vunpack.c.l.b16 %v387
    %v900 = vunpack.c.l.b16 %v388
    %v901 = vunpack.c.l.b16 %v389
    %v902 = vunpack.c.l.b16 %v390
    %v903 = vunpack.c.l.b16 %v391
    %v904 = vunpack.c.l.b16 %v392
    %v905 = vunpack.c.l.b16 %v393
    %v906 = vunpack.c.l.b16 %v394
    %v907 = vunpack.c.l.b16 %v395
    %v908 = vunpack.c.l.b16 %v396
    %v909 = vunpack.c.l.b16 %v397
    %v910 = vunpack.c.l.b16 %v398
    %v911 = vunpack.c.l.b16 %v399
    %v912 = vunpack.c.l.b16 %v400
    %v913 = vunpack.c.l.b16 %v401
    %v914 = vunpack.c.l.b16 %v402
    %v915 = vunpack.c.l.b16 %v403
    %v916 = vunpack.c.l.b16 %v404
    %v917 = vunpack.c.l.b16 %v405
    %v918 = vunpack.c.l.b16 %v406
    %v919 = vunpack.c.l.b16 %v407
    %v920 = vunpack.c.l.b16 %v408
    %v921 = vunpack.c.l.b16 %v409
    %v922 = vunpack.c.l.b16 %v410
    %v923 = vunpack.c.l.b16 %v411
    %v924 = vunpack.c.l.b16 %v412
    %v925 = vunpack.c.l.b16 %v413
    %v926 = vunpack.c.l.b16 %v414
    %v927 = vunpack.c.l.b16 %v415
    %v928 = vunpack.c.l.b16 %v416
    %v929 = vunpack.c.l.b16 %v417
    %v930 = vunpack.c.l.b16 %v418
    %v931 = vunpack.c.l.b16 %v419
    %v932 = vunpack.c.l.b16 %v420
    %v933 = vunpack.c.l.b16 %v421
    %v934 = vunpack.c.l.b16 %v422
    %v935 = vunpack.c.l.b16 %v423
    %v936 = vunpack.c.l.b16 %v424
    %v937 = vunpack.c.l.b16 %v425
    %v938 = vunpack.c.l.b16 %v426
    %v939 = vunpack.c.l.b16 %v427
    %v940 = vunpack.c.l.b16 %v428
    %v941 = vunpack.c.l.b16 %v429
    %v942 = vunpack.c.l.b16 %v430
    %v943 = vunpack.c.l.b16 %v431
    %v944 = vunpack.c.l.b16 %v432
    %v945 = vunpack.c.l.b16 %v433
    %v946 = vunpack.c.l.b16 %v434
    %v947 = vunpack.c.l.b16 %v435
    %v948 = vunpack.c.l.b16 %v436
    %v949 = vunpack.c.l.b16 %v437
    %v950 = vunpack.c.l.b16 %v438
    %v951 = vunpack.c.l.b16 %v439
    %v952 = vunpack.c.l.b16 %v440
    %v953 = vunpack.c.l.b16 %v441
    %v954 = vunpack.c.l.b16 %v442
    %v955 = vunpack.c.l.b16 %v443
    %v956 = vunpack.c.l.b16 %v444
    %v957 = vunpack.c.l.b16 %v445
    %v958 = vunpack.c.l.b16 %v446
    %v959 = vunpack.c.l.b16 %v447
    %v960 = vunpack.c.l.b16 %v448
    %v961 = vunpack.c.l.b16 %v449
    %v962 = vunpack.c.l.b16 %v450
    %v963 = vunpack.c.l.b16 %v451
    %v964 = vunpack.c.l.b16 %v452
    %v965 = vunpack.c.l.b16 %v453
    %v966 = vunpack.c.l.b16 %v454
    %v967 = vunpack.c.l.b16 %v455
    %v968 = vpack.c.b16 %v713, %v712
    %v969 = vpack.c.b16 %v715, %v714
    %v970 = vpack.c.b16 %v717, %v716
    %v971 = vpack.c.b16 %v719, %v718
    %v972 = vpack.c.b16 %v721, %v720
    %v973 = vpack.c.b16 %v723, %v722
    %v974 = vpack.c.b16 %v725, %v724
    %v975 = vpack.c.b16 %v727, %v726
    %v976 = vpack.c.b16 %v729, %v728
    %v977 = vpack.c.b16 %v731, %v730
    %v978 = vpack.c.b16 %v733, %v732
    %v979 = vpack.c.b16 %v735, %v734
    %v980 = vpack.c.b16 %v737, %v736
    %v981 = vpack.c.b16 %v739, %v738
    %v982 = vpack.c.b16 %v741, %v740
    %v983 = vpack.c.b16 %v743, %v742
    %v984 = vpack.c.b16 %v745, %v744
    %v985 = vpack.c.b16 %v747, %v746
    %v986 = vpack.c.b16 %v749, %v748
    %v987 = vpack.c.b16 %v751, %v750
    %v988 = vpack.c.b16 %v753, %v752
    %v989 = vpack.c.b16 %v755, %v754
    %v990 = vpack.c.b16 %v757, %v756
    %v991 = vpack.c.b16 %v759, %v758
    %v992 = vpack.c.b16 %v761, %v760
    %v993 = vpack.c.b16 %v763, %v762
    %v994 = vpack.c.b16 %v765, %v764
    %v995 = vpack.c.b16 %v767, %v766
    %v996 = vpack.c.b16 %v769, %v768
    %v997 = vpack.c.b16 %v771, %v770
    %v998 = vpack.c.b16 %v773, %v772
    %v999 = vpack.c.b16 %v775, %v774
    %v1000 = vpack.c.b16 %v777, %v776
    %v1001 = vpack.c.b16 %v779, %v778
    %v1002 = vpack.c.b16 %v781, %v780
    %v1003 = vpack.c.b16 %v783, %v782
    %v1004 = vpack.c.b16 %v785, %v784
    %v1005 = vpack.c.b16 %v787, %v786
    %v1006 = vpack.c.b16 %v789, %v788
    %v1007 = vpack.c.b16 %v791, %v790
    %v1008 = vpack.c.b16 %v793, %v792
    %v1009 = vpack.c.b16 %v795, %v794
    %v1010 = vpack.c.b16 %v797, %v796
    %v1011 = vpack.c.b16 %v799, %v798
    %v1012 = vpack.c.b16 %v801, %v800
    %v1013 = vpack.c.b16 %v803, %v802
    %v1014 = vpack.c.b16 %v805, %v804
    %v1015 = vpack.c.b16 %v807, %v806
    %v1016 = vpack.c.b16 %v809, %v808
    %v1017 = vpack.c.b16 %v811, %v810
    %v1018 = vpack.c.b16 %v813, %v812
    %v1019 = vpack.c.b16 %v815, %v814
    %v1020 = vpack.c.b16 %v817, %v816
    %v1021 = vpack.c.b16 %v819, %v818
    %v1022 = vpack.c.b16 %v821, %v820
    %v1023 = vpack.c.b16 %v823, %v822
    %v1024 = vpack.c.b16 %v825, %v824
    %v1025 = vpack.c.b16 %v827, %v826
    %v1026 = vpack.c.b16 %v829, %v828
    %v1027 = vpack.c.b16 %v831, %v830
    %v1028 = vpack.c.b16 %v833, %v832
    %v1029 = vpack.c.b16 %v835, %v834
    %v1030 = vpack.c.b16 %v837, %v836
    %v1031 = vpack.c.b16 %v839, %v838
    %v1032 = vpack.c.b16 %v841, %v840
    %v1033 = vpack.c.b16 %v843, %v842
    %v1034 = vpack.c.b16 %v845, %v844
    %v1035 = vpack.c.b16 %v847, %v846
    %v1036 = vpack.c.b16 %v849, %v848
    %v1037 = vpack.c.b16 %v851, %v850
    %v1038 = vpack.c.b16 %v853, %v852
    %v1039 = vpack.c.b16 %v855, %v854
    %v1040 = vpack.c.b16 %v857, %v856
    %v1041 = vpack.c.b16 %v859, %v858
    %v1042 = vpack.c.b16 %v861, %v860
    %v1043 = vpack.c.b16 %v863, %v862
    %v1044 = vpack.c.b16 %v865, %v864
    %v1045 = vpack.c.b16 %v867, %v866
    %v1046 = vpack.c.b16 %v869, %v868
    %v1047 = vpack.c.b16 %v871, %v870
    %v1048 = vpack.c.b16 %v873, %v872
    %v1049 = vpack.c.b16 %v875, %v874
    %v1050 = vpack.c.b16 %v877, %v876
    %v1051 = vpack.c.b16 %v879, %v878
    %v1052 = vpack.c.b16 %v881, %v880
    %v1053 = vpack.c.b16 %v883, %v882
    %v1054 = vpack.c.b16 %v885, %v884
    %v1055 = vpack.c.b16 %v887, %v886
    %v1056 = vpack.c.b16 %v889, %v888
    %v1057 = vpack.c.b16 %v891, %v890
    %v1058 = vpack.c.b16 %v893, %v892
    %v1059 = vpack.c.b16 %v895, %v894
    %v1060 = vpack.c.b16 %v897, %v896
    %v1061 = vpack.c.b16 %v899, %v898
    %v1062 = vpack.c.b16 %v901, %v900
    %v1063 = vpack.c.b16 %v903, %v902
    %v1064 = vpack.c.b16 %v905, %v904
    %v1065 = vpack.c.b16 %v907, %v906
    %v1066 = vpack.c.b16 %v909, %v908
    %v1067 = vpack.c.b16 %v911, %v910
    %v1068 = vpack.c.b16 %v913, %v912
    %v1069 = vpack.c.b16 %v915, %v914
    %v1070 = vpack.c.b16 %v917, %v916
    %v1071 = vpack.c.b16 %v919, %v918
    %v1072 = vpack.c.b16 %v921, %v920
    %v1073 = vpack.c.b16 %v923, %v922
    %v1074 = vpack.c.b16 %v925, %v924
    %v1075 = vpack.c.b16 %v927, %v926
    %v1076 = vpack.c.b16 %v929, %v928
    %v1077 = vpack.c.b16 %v931, %v930
    %v1078 = vpack.c.b16 %v933, %v932
    %v1079 = vpack.c.b16 %v935, %v934
    %v1080 = vpack.c.b16 %v937, %v936
    %v1081 = vpack.c.b16 %v939, %v938
    %v1082 = vpack.c.b16 %v941, %v940
    %v1083 = vpack.c.b16 %v943, %v942
    %v1084 = vpack.c.b16 %v945, %v944
    %v1085 = vpack.c.b16 %v947, %v946
    %v1086 = vpack.c.b16 %v949, %v948
    %v1087 = vpack.c.b16 %v951, %v950
    %v1088 = vpack.c.b16 %v953, %v952
    %v1089 = vpack.c.b16 %v955, %v954
    %v1090 = vpack.c.b16 %v957, %v956
    %v1091 = vpack.c.b16 %v959, %v958
    %v1092 = vpack.c.b16 %v961, %v960
    %v1093 = vpack.c.b16 %v963, %v962
    %v1094 = vpack.c.b16 %v965, %v964
    %v1095 = vpack.c.b16 %v967, %v966
    %1224 = vmatprep.subr.bf16.mxu0 0
    %1225 = vmatpush1.bf16.msra.mxu0 %v968
    %1226 = vmatprep.subr.bf16.mxu0 0
    %1227 = vmatpush1.bf16.msra.mxu0 %v969
    %1228 = vmatprep.subr.bf16.mxu0 0
    %1229 = vmatpush1.bf16.msra.mxu0 %v970
    %1230 = vmatprep.subr.bf16.mxu0 0
    %1231 = vmatpush1.bf16.msra.mxu0 %v971
    %1232 = vmatprep.subr.bf16.mxu0 0
    %1233 = vmatpush1.bf16.msra.mxu0 %v972
    %1234 = vmatprep.subr.bf16.mxu0 0
    %1235 = vmatpush1.bf16.msra.mxu0 %v973
    %1236 = vmatprep.subr.bf16.mxu0 0
    %1237 = vmatpush1.bf16.msra.mxu0 %v974
    %1238 = vmatprep.subr.bf16.mxu0 0
    %1239 = vmatpush1.bf16.msra.mxu0 %v975
    %1240 = vmatprep.subr.bf16.mxu0 0
    %1241 = vmatpush1.bf16.msra.mxu0 %v976
    %1242 = vmatprep.subr.bf16.mxu0 0
    %1243 = vmatpush1.bf16.msra.mxu0 %v977
    %1244 = vmatprep.subr.bf16.mxu0 0
    %1245 = vmatpush1.bf16.msra.mxu0 %v978
    %1246 = vmatprep.subr.bf16.mxu0 0
    %1247 = vmatpush1.bf16.msra.mxu0 %v979
    %1248 = vmatprep.subr.bf16.mxu0 0
    %1249 = vmatpush1.bf16.msra.mxu0 %v980
    %1250 = vmatprep.subr.bf16.mxu0 0
    %1251 = vmatpush1.bf16.msra.mxu0 %v981
    %1252 = vmatprep.subr.bf16.mxu0 0
    %1253 = vmatpush1.bf16.msra.mxu0 %v982
    %1254 = vmatprep.subr.bf16.mxu0 0
    %1255 = vmatpush1.bf16.msra.mxu0 %v983
    %1256 = vmatprep.mubr.bf16.mxu0 %v185
    %1257 = vmatmul.mubr.bf16.gmra.mrb[0].mxu0 %v184
    %v1258 = vpop.f32.mrb[0].mxu0
    %v1259 = vadd.f32 0.0, %v1258
    %v1260 = vpop.f32.mrb[0].mxu0
    %v1261 = vpop.f32.mrb[0].mxu0
    %v1262 = vadd.f32 0.0, %v1261
    %v1263 = vpop.f32.mrb[0].mxu0
    %1264 = vdwg.mxu0
    %1265 = vmatprep.subr.bf16.mxu0 0
    %1266 = vmatpush1.bf16.msra.mxu0 %v984
    %1267 = vmatprep.subr.bf16.mxu0 0
    %1268 = vmatpush1.bf16.msra.mxu0 %v985
    %1269 = vmatprep.subr.bf16.mxu0 0
    %1270 = vmatpush1.bf16.msra.mxu0 %v986
    %1271 = vmatprep.subr.bf16.mxu0 0
    %1272 = vmatpush1.bf16.msra.mxu0 %v987
    %1273 = vmatprep.subr.bf16.mxu0 0
    %1274 = vmatpush1.bf16.msra.mxu0 %v988
    %1275 = vmatprep.subr.bf16.mxu0 0
    %1276 = vmatpush1.bf16.msra.mxu0 %v989
    %1277 = vmatprep.subr.bf16.mxu0 0
    %1278 = vmatpush1.bf16.msra.mxu0 %v990
    %1279 = vmatprep.subr.bf16.mxu0 0
    %1280 = vmatpush1.bf16.msra.mxu0 %v991
    %1281 = vmatprep.subr.bf16.mxu0 0
    %1282 = vmatpush1.bf16.msra.mxu0 %v992
    %1283 = vmatprep.subr.bf16.mxu0 0
    %1284 = vmatpush1.bf16.msra.mxu0 %v993
    %1285 = vmatprep.subr.bf16.mxu0 0
    %1286 = vmatpush1.bf16.msra.mxu0 %v994
    %1287 = vmatprep.subr.bf16.mxu0 0
    %1288 = vmatpush1.bf16.msra.mxu0 %v995
    %1289 = vmatprep.subr.bf16.mxu0 0
    %1290 = vmatpush1.bf16.msra.mxu0 %v996
    %1291 = vmatprep.subr.bf16.mxu0 0
    %1292 = vmatpush1.bf16.msra.mxu0 %v997
    %1293 = vmatprep.subr.bf16.mxu0 0
    %1294 = vmatpush1.bf16.msra.mxu0 %v998
    %1295 = vmatprep.subr.bf16.mxu0 0
    %1296 = vmatpush1.bf16.msra.mxu0 %v999
    %1297 = vmatprep.mubr.bf16.mxu0 %v187
    %1298 = vmatmul.mubr.bf16.gmra.mrb[0].mxu0 %v186
    %v1299 = vpop.f32.mrb[0].mxu0
    %v1300 = vadd.f32 %v1259, %v1299
    %v1301 = vpop.f32.mrb[0].mxu0
    %v1302 = vpop.f32.mrb[0].mxu0
    %v1303 = vadd.f32 %v1262, %v1302
    %v1304 = vpop.f32.mrb[0].mxu0
    %1305 = vdwg.mxu0
    %1306 = vmatprep.subr.bf16.mxu0 0
    %1307 = vmatpush1.bf16.msra.mxu0 %v1000
    %1308 = vmatprep.subr.bf16.mxu0 0
    %1309 = vmatpush1.bf16.msra.mxu0 %v1001
    %1310 = vmatprep.subr.bf16.mxu0 0
    %1311 = vmatpush1.bf16.msra.mxu0 %v1002
    %1312 = vmatprep.subr.bf16.mxu0 0
    %1313 = vmatpush1.bf16.msra.mxu0 %v1003
    %1314 = vmatprep.subr.bf16.mxu0 0
    %1315 = vmatpush1.bf16.msra.mxu0 %v1004
    %1316 = vmatprep.subr.bf16.mxu0 0
    %1317 = vmatpush1.bf16.msra.mxu0 %v1005
    %1318 = vmatprep.subr.bf16.mxu0 0
    %1319 = vmatpush1.bf16.msra.mxu0 %v1006
    %1320 = vmatprep.subr.bf16.mxu0 0
    %1321 = vmatpush1.bf16.msra.mxu0 %v1007
    %1322 = vmatprep.subr.bf16.mxu0 0
    %1323 = vmatpush1.bf16.msra.mxu0 %v1008
    %1324 = vmatprep.subr.bf16.mxu0 0
    %1325 = vmatpush1.bf16.msra.mxu0 %v1009
    %1326 = vmatprep.subr.bf16.mxu0 0
    %1327 = vmatpush1.bf16.msra.mxu0 %v1010
    %1328 = vmatprep.subr.bf16.mxu0 0
    %1329 = vmatpush1.bf16.msra.mxu0 %v1011
    %1330 = vmatprep.subr.bf16.mxu0 0
    %1331 = vmatpush1.bf16.msra.mxu0 %v1012
    %1332 = vmatprep.subr.bf16.mxu0 0
    %1333 = vmatpush1.bf16.msra.mxu0 %v1013
    %1334 = vmatprep.subr.bf16.mxu0 0
    %1335 = vmatpush1.bf16.msra.mxu0 %v1014
    %1336 = vmatprep.subr.bf16.mxu0 0
    %1337 = vmatpush1.bf16.msra.mxu0 %v1015
    %1338 = vmatprep.mubr.bf16.mxu0 %v189
    %1339 = vmatmul.mubr.bf16.gmra.mrb[0].mxu0 %v188
    %v1340 = vpop.f32.mrb[0].mxu0
    %v1341 = vadd.f32 %v1300, %v1340
    %v1342 = vpop.f32.mrb[0].mxu0
    %v1343 = vpop.f32.mrb[0].mxu0
    %v1344 = vadd.f32 %v1303, %v1343
    %v1345 = vpop.f32.mrb[0].mxu0
    %1346 = vdwg.mxu0
    %1347 = vmatprep.subr.bf16.mxu0 0
    %1348 = vmatpush1.bf16.msra.mxu0 %v1016
    %1349 = vmatprep.subr.bf16.mxu0 0
    %1350 = vmatpush1.bf16.msra.mxu0 %v1017
    %1351 = vmatprep.subr.bf16.mxu0 0
    %1352 = vmatpush1.bf16.msra.mxu0 %v1018
    %1353 = vmatprep.subr.bf16.mxu0 0
    %1354 = vmatpush1.bf16.msra.mxu0 %v1019
    %1355 = vmatprep.subr.bf16.mxu0 0
    %1356 = vmatpush1.bf16.msra.mxu0 %v1020
    %1357 = vmatprep.subr.bf16.mxu0 0
    %1358 = vmatpush1.bf16.msra.mxu0 %v1021
    %1359 = vmatprep.subr.bf16.mxu0 0
    %1360 = vmatpush1.bf16.msra.mxu0 %v1022
    %1361 = vmatprep.subr.bf16.mxu0 0
    %1362 = vmatpush1.bf16.msra.mxu0 %v1023
    %1363 = vmatprep.subr.bf16.mxu0 0
    %1364 = vmatpush1.bf16.msra.mxu0 %v1024
    %1365 = vmatprep.subr.bf16.mxu0 0
    %1366 = vmatpush1.bf16.msra.mxu0 %v1025
    %1367 = vmatprep.subr.bf16.mxu0 0
    %1368 = vmatpush1.bf16.msra.mxu0 %v1026
    %1369 = vmatprep.subr.bf16.mxu0 0
    %1370 = vmatpush1.bf16.msra.mxu0 %v1027
    %1371 = vmatprep.subr.bf16.mxu0 0
    %1372 = vmatpush1.bf16.msra.mxu0 %v1028
    %1373 = vmatprep.subr.bf16.mxu0 0
    %1374 = vmatpush1.bf16.msra.mxu0 %v1029
    %1375 = vmatprep.subr.bf16.mxu0 0
    %1376 = vmatpush1.bf16.msra.mxu0 %v1030
    %1377 = vmatprep.subr.bf16.mxu0 0
    %1378 = vmatpush1.bf16.msra.mxu0 %v1031
    %1379 = vmatprep.mubr.bf16.mxu0 %v191
    %1380 = vmatmul.mubr.bf16.gmra.mrb[0].mxu0 %v190
    %v1381 = vpop.f32.mrb[0].mxu0
    %v1382 = vadd.f32 %v1341, %v1381
    %v1383 = vpop.f32.mrb[0].mxu0
    %v1384 = vpop.f32.mrb[0].mxu0
    %v1385 = vadd.f32 %v1344, %v1384
    %v1386 = vpop.f32.mrb[0].mxu0
    %1387 = vdwg.mxu0
    %1388 = vmatprep.subr.bf16.mxu0 0
    %1389 = vmatpush1.bf16.msra.mxu0 %v1032
    %1390 = vmatprep.subr.bf16.mxu0 0
    %1391 = vmatpush1.bf16.msra.mxu0 %v1033
    %1392 = vmatprep.subr.bf16.mxu0 0
    %1393 = vmatpush1.bf16.msra.mxu0 %v1034
    %1394 = vmatprep.subr.bf16.mxu0 0
    %1395 = vmatpush1.bf16.msra.mxu0 %v1035
    %1396 = vmatprep.subr.bf16.mxu0 0
    %1397 = vmatpush1.bf16.msra.mxu0 %v1036
    %1398 = vmatprep.subr.bf16.mxu0 0
    %1399 = vmatpush1.bf16.msra.mxu0 %v1037
    %1400 = vmatprep.subr.bf16.mxu0 0
    %1401 = vmatpush1.bf16.msra.mxu0 %v1038
    %1402 = vmatprep.subr.bf16.mxu0 0
    %1403 = vmatpush1.bf16.msra.mxu0 %v1039
    %1404 = vmatprep.subr.bf16.mxu0 0
    %1405 = vmatpush1.bf16.msra.mxu0 %v1040
    %1406 = vmatprep.subr.bf16.mxu0 0
    %1407 = vmatpush1.bf16.msra.mxu0 %v1041
    %1408 = vmatprep.subr.bf16.mxu0 0
    %1409 = vmatpush1.bf16.msra.mxu0 %v1042
    %1410 = vmatprep.subr.bf16.mxu0 0
    %1411 = vmatpush1.bf16.msra.mxu0 %v1043
    %1412 = vmatprep.subr.bf16.mxu0 0
    %1413 = vmatpush1.bf16.msra.mxu0 %v1044
    %1414 = vmatprep.subr.bf16.mxu0 0
    %1415 = vmatpush1.bf16.msra.mxu0 %v1045
    %1416 = vmatprep.subr.bf16.mxu0 0
    %1417 = vmatpush1.bf16.msra.mxu0 %v1046
    %1418 = vmatprep.subr.bf16.mxu0 0
    %1419 = vmatpush1.bf16.msra.mxu0 %v1047
    %1420 = vmatprep.mubr.bf16.mxu0 %v193
    %1421 = vmatmul.mubr.bf16.gmra.mrb[0].mxu0 %v192
    %v1422 = vpop.f32.mrb[0].mxu0
    %v1423 = vadd.f32 %v1382, %v1422
    %v1424 = vpop.f32.mrb[0].mxu0
    %v1425 = vpop.f32.mrb[0].mxu0
    %v1426 = vadd.f32 %v1385, %v1425
    %v1427 = vpop.f32.mrb[0].mxu0
    %1428 = vdwg.mxu0
    %1429 = vmatprep.subr.bf16.mxu0 0
    %1430 = vmatpush1.bf16.msra.mxu0 %v1048
    %1431 = vmatprep.subr.bf16.mxu0 0
    %1432 = vmatpush1.bf16.msra.mxu0 %v1049
    %1433 = vmatprep.subr.bf16.mxu0 0
    %1434 = vmatpush1.bf16.msra.mxu0 %v1050
    %1435 = vmatprep.subr.bf16.mxu0 0
    %1436 = vmatpush1.bf16.msra.mxu0 %v1051
    %1437 = vmatprep.subr.bf16.mxu0 0
    %1438 = vmatpush1.bf16.msra.mxu0 %v1052
    %1439 = vmatprep.subr.bf16.mxu0 0
    %1440 = vmatpush1.bf16.msra.mxu0 %v1053
    %1441 = vmatprep.subr.bf16.mxu0 0
    %1442 = vmatpush1.bf16.msra.mxu0 %v1054
    %1443 = vmatprep.subr.bf16.mxu0 0
    %1444 = vmatpush1.bf16.msra.mxu0 %v1055
    %1445 = vmatprep.subr.bf16.mxu0 0
    %1446 = vmatpush1.bf16.msra.mxu0 %v1056
    %1447 = vmatprep.subr.bf16.mxu0 0
    %1448 = vmatpush1.bf16.msra.mxu0 %v1057
    %1449 = vmatprep.subr.bf16.mxu0 0
    %1450 = vmatpush1.bf16.msra.mxu0 %v1058
    %1451 = vmatprep.subr.bf16.mxu0 0
    %1452 = vmatpush1.bf16.msra.mxu0 %v1059
    %1453 = vmatprep.subr.bf16.mxu0 0
    %1454 = vmatpush1.bf16.msra.mxu0 %v1060
    %1455 = vmatprep.subr.bf16.mxu0 0
    %1456 = vmatpush1.bf16.msra.mxu0 %v1061
    %1457 = vmatprep.subr.bf16.mxu0 0
    %1458 = vmatpush1.bf16.msra.mxu0 %v1062
    %1459 = vmatprep.subr.bf16.mxu0 0
    %1460 = vmatpush1.bf16.msra.mxu0 %v1063
    %1461 = vmatprep.mubr.bf16.mxu0 %v195
    %1462 = vmatmul.mubr.bf16.gmra.mrb[0].mxu0 %v194
    %v1463 = vpop.f32.mrb[0].mxu0
    %v1464 = vadd.f32 %v1423, %v1463
    %v1465 = vpop.f32.mrb[0].mxu0
    %v1466 = vpop.f32.mrb[0].mxu0
    %v1467 = vadd.f32 %v1426, %v1466
    %v1468 = vpop.f32.mrb[0].mxu0
    %1469 = vdwg.mxu0
    %1470 = vmatprep.subr.bf16.mxu0 0
    %1471 = vmatpush1.bf16.msra.mxu0 %v1064
    %1472 = vmatprep.subr.bf16.mxu0 0
    %1473 = vmatpush1.bf16.msra.mxu0 %v1065
    %1474 = vmatprep.subr.bf16.mxu0 0
    %1475 = vmatpush1.bf16.msra.mxu0 %v1066
    %1476 = vmatprep.subr.bf16.mxu0 0
    %1477 = vmatpush1.bf16.msra.mxu0 %v1067
    %1478 = vmatprep.subr.bf16.mxu0 0
    %1479 = vmatpush1.bf16.msra.mxu0 %v1068
    %1480 = vmatprep.subr.bf16.mxu0 0
    %1481 = vmatpush1.bf16.msra.mxu0 %v1069
    %1482 = vmatprep.subr.bf16.mxu0 0
    %1483 = vmatpush1.bf16.msra.mxu0 %v1070
    %1484 = vmatprep.subr.bf16.mxu0 0
    %1485 = vmatpush1.bf16.msra.mxu0 %v1071
    %1486 = vmatprep.subr.bf16.mxu0 0
    %1487 = vmatpush1.bf16.msra.mxu0 %v1072
    %1488 = vmatprep.subr.bf16.mxu0 0
    %1489 = vmatpush1.bf16.msra.mxu0 %v1073
    %1490 = vmatprep.subr.bf16.mxu0 0
    %1491 = vmatpush1.bf16.msra.mxu0 %v1074
    %1492 = vmatprep.subr.bf16.mxu0 0
    %1493 = vmatpush1.bf16.msra.mxu0 %v1075
    %1494 = vmatprep.subr.bf16.mxu0 0
    %1495 = vmatpush1.bf16.msra.mxu0 %v1076
    %1496 = vmatprep.subr.bf16.mxu0 0
    %1497 = vmatpush1.bf16.msra.mxu0 %v1077
    %1498 = vmatprep.subr.bf16.mxu0 0
    %1499 = vmatpush1.bf16.msra.mxu0 %v1078
    %1500 = vmatprep.subr.bf16.mxu0 0
    %1501 = vmatpush1.bf16.msra.mxu0 %v1079
    %1502 = vmatprep.mubr.bf16.mxu0 %v197
    %1503 = vmatmul.mubr.bf16.gmra.mrb[0].mxu0 %v196
    %v1504 = vpop.f32.mrb[0].mxu0
    %v1505 = vadd.f32 %v1464, %v1504
    %v1506 = vpop.f32.mrb[0].mxu0
    %v1507 = vpop.f32.mrb[0].mxu0
    %v1508 = vadd.f32 %v1467, %v1507
    %v1509 = vpop.f32.mrb[0].mxu0
    %1510 = vdwg.mxu0
    %1511 = vmatprep.subr.bf16.mxu0 0
    %1512 = vmatpush1.bf16.msra.mxu0 %v1080
    %1513 = vmatprep.subr.bf16.mxu0 0
    %1514 = vmatpush1.bf16.msra.mxu0 %v1081
    %1515 = vmatprep.subr.bf16.mxu0 0
    %1516 = vmatpush1.bf16.msra.mxu0 %v1082
    %1517 = vmatprep.subr.bf16.mxu0 0
    %1518 = vmatpush1.bf16.msra.mxu0 %v1083
    %1519 = vmatprep.subr.bf16.mxu0 0
    %1520 = vmatpush1.bf16.msra.mxu0 %v1084
    %1521 = vmatprep.subr.bf16.mxu0 0
    %1522 = vmatpush1.bf16.msra.mxu0 %v1085
    %1523 = vmatprep.subr.bf16.mxu0 0
    %1524 = vmatpush1.bf16.msra.mxu0 %v1086
    %1525 = vmatprep.subr.bf16.mxu0 0
    %1526 = vmatpush1.bf16.msra.mxu0 %v1087
    %1527 = vmatprep.subr.bf16.mxu0 0
    %1528 = vmatpush1.bf16.msra.mxu0 %v1088
    %1529 = vmatprep.subr.bf16.mxu0 0
    %1530 = vmatpush1.bf16.msra.mxu0 %v1089
    %1531 = vmatprep.subr.bf16.mxu0 0
    %1532 = vmatpush1.bf16.msra.mxu0 %v1090
    %1533 = vmatprep.subr.bf16.mxu0 0
    %1534 = vmatpush1.bf16.msra.mxu0 %v1091
    %1535 = vmatprep.subr.bf16.mxu0 0
    %1536 = vmatpush1.bf16.msra.mxu0 %v1092
    %1537 = vmatprep.subr.bf16.mxu0 0
    %1538 = vmatpush1.bf16.msra.mxu0 %v1093
    %1539 = vmatprep.subr.bf16.mxu0 0
    %1540 = vmatpush1.bf16.msra.mxu0 %v1094
    %1541 = vmatprep.subr.bf16.mxu0 0
    %1542 = vmatpush1.bf16.msra.mxu0 %v1095
    %1543 = vmatprep.mubr.bf16.mxu0 %v199
    %1544 = vmatmul.mubr.bf16.gmra.mrb[0].mxu0 %v198
    %v1545 = vpop.f32.mrb[0].mxu0
    %v1546 = vadd.f32 %v1505, %v1545
    %v1547 = vpop.f32.mrb[0].mxu0
    %v1548 = vpop.f32.mrb[0].mxu0
    %v1549 = vadd.f32 %v1508, %v1548
    %v1550 = vpop.f32.mrb[0].mxu0
    %1551 = vdwg.mxu0
    %vm1552 = vcmask 261120
    %1553 = vst.msk [vmem:[#allocation3] sm:$0xff] %vm1552, %v1546
    %1554 = vst.msk [vmem:[#allocation3 + $0x8] sm:$0xff] %vm1552, %v1549
    // Predicated region
    $region18: #{tpu_custom_call.1} parent=1 // pred_check
      _
    $region19: #{tpu_custom_call.1} parent=1 // pred_check_branch
      %1556 = sbr.rel (0) target = $region21
    $region20: #{tpu_custom_call.1} parent=1 // pred_region
      %s1558 = ssub.s32 256, 256
      %1559 = vsyncadd [#allocation4], %s1558
      %s1560 = sshll.u32 [#allocation3], 4
      %s1561 = int_to_ptr.vmem [resolvable:$true] %s1560
      %1566 = dma.vmem_to_hbm [thread:$0]  %s1561, 256, %s4, [#allocation4], 128, 128, 8
    $region21: #{tpu_custom_call.1} parent=1 // pred_fallthru
      _
    // Predicated region
    $region22: #{tpu_custom_call.1} parent=1 // pred_check
      _
    $region23: #{tpu_custom_call.1} parent=1 // pred_check_branch
      %1568 = sbr.rel (0) target = $region25
    $region24: #{tpu_custom_call.1} parent=1 // pred_region
      %1569 = dma.done [#allocation4], 256
    $region25: #{tpu_custom_call.1} parent=1 // pred_fallthru
      _
    %1570 = vsyncpa [#allocation4], 1

</llo_original>
